<compile_context>
chip_gen: v7x
topology: tpu7x:2x2x1
jax: 0.10.0
libtpu: 0.0.40
codegen_flags: <defaults>
</compile_context>

<pallas_src>
import functools

import numpy as np
import jax
import jax.numpy as jnp
from jax.experimental import pallas as pl
from jax.experimental.pallas import tpu as pltpu


# ---------------------------------------------------------------------------
# Pallas kernel: (optional) entropy map + 1x1-conv discriminator + BCE loss,
# tiled over the flattened spatial axis with a running per-pixel-loss accumulator.
# ---------------------------------------------------------------------------
def _loss_d_kernel(xr_ref, xf_ref, w1_ref, w2_ref, b_ref, out_ref, acc_ref,
                   *, apply_entropy, n_ch, k):
    # xr_ref / xf_ref : (C*k, T)  packed probability tiles (row r -> channel r//k)
    # w1_ref / w2_ref : (C*k, 1)  packed (pre-scaled) weights for the x / (1-x)
    #                             halves of cat([x, 1-x], dim=1)
    # b_ref           : (1, 1)    conv bias
    # out_ref         : (1, 128)  per-batch-element partial loss sum (broadcast)
    # acc_ref         : (k, T)    running sum of per-pixel BCE values
    m = pl.program_id(1)

    @pl.when(m == 0)
    def _init():
        acc_ref[...] = jnp.zeros_like(acc_ref)

    xr = xr_ref[...].astype(jnp.float32)
    xf = xf_ref[...].astype(jnp.float32)
    w1 = w1_ref[...].astype(jnp.float32)
    w2 = w2_ref[...].astype(jnp.float32)
    b = b_ref[0, 0]

    def features(x):
        # weighted cat([x, 1-x]) channels; for the entropy head the constant
        # -1/log2(2C) is already folded into w1/w2 on the host.
        xm = 1.0 - x
        if apply_entropy:
            g1 = x * jnp.log2(x + 1e-30)
            g2 = xm * jnp.log2(xm + 1e-30)
        else:
            g1 = x
            g2 = xm
        return w1 * g1 + w2 * g2                         # (C*k, T)

    def channel_reduce(t):
        # per-pixel sum over channels; rows are (channel, spatial-segment) pairs.
        if k == 1:
            return jnp.sum(t, axis=0, keepdims=True)     # (1, T)
        z = t[0:k, :]
        for c in range(1, n_ch):
            z = z + t[c * k:(c + 1) * k, :]
        return z                                         # (k, T)

    z_r = channel_reduce(features(xr)) + b               # real logits (label 1)
    z_f = channel_reduce(features(xf)) + b               # fake logits (label 0)

    # stable BCE-with-logits: bce(z,1)=relu(-z)+softplus(-|z|), bce(z,0)=relu(z)+softplus(-|z|)
    bce = (jnp.maximum(-z_r, 0.0) + jnp.log1p(jnp.exp(-jnp.abs(z_r)))
           + jnp.maximum(z_f, 0.0) + jnp.log1p(jnp.exp(-jnp.abs(z_f))))
    acc_ref[...] += bce

    @pl.when(m == pl.num_programs(1) - 1)
    def _finalize():
        s = jnp.sum(acc_ref[...])
        out_ref[...] = jnp.full(out_ref.shape, s, dtype=out_ref.dtype)


# ---------------------------------------------------------------------------
# Wrapper / glue
# ---------------------------------------------------------------------------
def _pick_tile(t_total, max_tile):
    """Largest legal lane tile: the full axis if it fits, else a multiple of 128
    that evenly divides t_total."""
    if t_total <= max_tile:
        return t_total
    tile = max_tile - (max_tile % 128)
    while tile >= 128:
        if t_total % tile == 0:
            return tile
        tile -= 128
    # TODO(synk): add lane masking for spatial sizes not divisible by 128.
    return t_total


def _run_head(x_real_nchw, x_fake_nchw, w, b, *, apply_entropy, max_tile_lanes):
    n, c, h, wd = x_real_nchw.shape
    hw = h * wd

    # pack spatial into sublanes so f32 (8,128) vregs are full for small C
    k = max(1, 8 // c)
    while k > 1 and hw % k != 0:
        k //= 2
    t_total = hw // k

    # free reshapes (no transpose, no extra HBM pass): NCHW -> (N, C*k, HW//k)
    xr = x_real_nchw.reshape(n, c * k, t_total)
    xf = x_fake_nchw.reshape(n, c * k, t_total)

    # host-side weight prep: split the (2C,1) 1x1-conv weights into the x / (1-x)
    # halves, fold the entropy scale, replicate across the k spatial packing.
    w = w.astype(jnp.float32)
    w1, w2 = w[:c], w[c:]
    if apply_entropy:
        scale = np.float32(-1.0 / np.log2(2 * c))
        w1 = w1 * scale
        w2 = w2 * scale
    w1p = jnp.repeat(w1, k, axis=0)          # (C*k, 1)
    w2p = jnp.repeat(w2, k, axis=0)          # (C*k, 1)
    b = b.astype(jnp.float32).reshape(1, 1)

    tile = _pick_tile(t_total, max_tile_lanes)
    m_tiles = t_total // tile

    kernel = functools.partial(_loss_d_kernel, apply_entropy=apply_entropy,
                               n_ch=c, k=k)
    data_spec = pl.BlockSpec((None, c * k, tile), lambda i, m: (i, 0, m))
    const_spec = pl.BlockSpec((c * k, 1), lambda i, m: (0, 0))
    bias_spec = pl.BlockSpec((1, 1), lambda i, m: (0, 0))

    partials = pl.pallas_call(
        kernel,
        out_shape=jax.ShapeDtypeStruct((n, 1, 128), jnp.float32),
        grid_spec=pltpu.PrefetchScalarGridSpec(
            num_scalar_prefetch=0,
            grid=(n, m_tiles),
            in_specs=[data_spec, data_spec, const_spec, const_spec, bias_spec],
            out_specs=pl.BlockSpec((None, 1, 128), lambda i, m: (i, 0, 0)),
            scratch_shapes=[pltpu.VMEM((k, tile), jnp.float32)]),
        compiler_params=pltpu.CompilerParams(
            dimension_semantics=("parallel", "arbitrary"),
            vmem_limit_bytes=32 * 1024 * 1024),
    )(xr, xf, w1p, w2p, b)

    total = jnp.sum(partials[:, 0, 0])
    return 0.5 * total / np.float32(n * hw)


def loss_D(x_SM_main, x_TSM_main, x_SM_aux, x_TSM_aux, params, *, max_tile_lanes=2048):
    return {
        "main": _run_head(x_SM_main, x_TSM_main, params["main_w"], params["main_b"],
                          apply_entropy=True, max_tile_lanes=max_tile_lanes),
        "aux": _run_head(x_SM_aux, x_TSM_aux, params["aux_w"], params["aux_b"],
                         apply_entropy=False, max_tile_lanes=max_tile_lanes),
    }


# ---------------------------------------------------------------------------
# Pure-JAX reference (numerical sanity check)
# ---------------------------------------------------------------------------
def _loss_D_ref(x_SM_main, x_TSM_main, x_SM_aux, x_TSM_aux, params):
    def prob2entropy(p):
        c = p.shape[1]
        return -p * jnp.log2(p + 1e-30) / np.log2(c)

    def disc(p, w, b):  # 1x1 conv
        return jnp.einsum("nchw,c->nhw", p, w[:, 0]) + b[0, 0]

    def bce(z, y):
        return jnp.mean(jnp.maximum(z, 0.0) - z * y + jnp.log1p(jnp.exp(-jnp.abs(z))))

    def head(x_real, x_fake, w, b, ent):
        pr = jnp.concatenate([x_real, 1 - x_real], axis=1)
        pf = jnp.concatenate([x_fake, 1 - x_fake], axis=1)
        if ent:
            pr, pf = prob2entropy(pr), prob2entropy(pf)
        return 0.5 * (bce(disc(pr, w, b), 1.0) + bce(disc(pf, w, b), 0.0))

    return {
        "main": head(x_SM_main, x_TSM_main, params["main_w"], params["main_b"], True),
        "aux": head(x_SM_aux, x_TSM_aux, params["aux_w"], params["aux_b"], False),
    }


if __name__ == "__main__":
    key = jax.random.PRNGKey(0)
    k1, k2, k3, k4, k5, k6 = jax.random.split(key, 6)

    # Probability maps (as produced upstream by a sigmoid), NCHW.
    N, C, H, W = 2, 4, 32, 32            # main head
    Ha, Wa = 16, 16                      # aux head (smaller spatial)
    x_SM_main = jax.nn.sigmoid(jax.random.normal(k1, (N, C, H, W), jnp.float32))
    x_TSM_main = jax.nn.sigmoid(jax.random.normal(k2, (N, C, H, W), jnp.float32))
    x_SM_aux = jax.nn.sigmoid(jax.random.normal(k3, (N, C, Ha, Wa), jnp.float32))
    x_TSM_aux = jax.nn.sigmoid(jax.random.normal(k4, (N, C, Ha, Wa), jnp.float32))

    # Deterministic synthetic discriminator parameters (1x1 conv over 2C channels).
    params = {
        "main_w": 0.1 * jax.random.normal(k5, (2 * C, 1), jnp.float32),
        "main_b": jnp.zeros((1, 1), jnp.float32),
        "aux_w": 0.1 * jax.random.normal(k6, (2 * C, 1), jnp.float32),
        "aux_b": jnp.zeros((1, 1), jnp.float32),
    }

    # small max_tile_lanes so the demo exercises the multi-tile pipelined path
    # (main head: grid (2, 2); aux head: grid (2, 1)).
    out = loss_D(x_SM_main, x_TSM_main, x_SM_aux, x_TSM_aux, params,
                 max_tile_lanes=256)
    out = jax.tree_util.tree_map(jax.block_until_ready, out)

    ref = _loss_D_ref(x_SM_main, x_TSM_main, x_SM_aux, x_TSM_aux, params)
    np.testing.assert_allclose(np.array(out["main"]), np.array(ref["main"]), rtol=1e-5, atol=1e-5)
    np.testing.assert_allclose(np.array(out["aux"]), np.array(ref["aux"]), rtol=1e-5, atol=1e-5)

    print("KERNEL_OK")
</pallas_src>

<mosaic_0001>
module attributes {stable_mosaic.version = 11 : i64} {
  func.func @_loss_d_kernel(%arg0: i32, %arg1: i32, %arg2: memref<1x8x256xf32, #tpu.memory_space<vmem>>, %arg3: memref<1x8x256xf32, #tpu.memory_space<vmem>>, %arg4: memref<8x1xf32, #tpu.memory_space<vmem>>, %arg5: memref<8x1xf32, #tpu.memory_space<vmem>>, %arg6: memref<1x1xf32, #tpu.memory_space<vmem>>, %arg7: memref<1x1x128xf32, #tpu.memory_space<vmem>>, %arg8: memref<2x256xf32, #tpu.memory_space<vmem>>) attributes {dimension_semantics = [#tpu.dimension_semantics<parallel>, #tpu.dimension_semantics<arbitrary>], iteration_bounds = array<i64: 2, 2>, scalar_prefetch = 0 : i64, scratch_operands = 1 : i64, tpu.core_type = #tpu.core_type<tc>, window_params = [{transform_indices = @transform_0, window_bounds = array<i64: 1, 8, 256>}, {transform_indices = @transform_1, window_bounds = array<i64: 1, 8, 256>}, {pipeline_mode = #tpu.pipeline_mode<synchronous>, transform_indices = @transform_2, window_bounds = array<i64: 8, 1>}, {pipeline_mode = #tpu.pipeline_mode<synchronous>, transform_indices = @transform_3, window_bounds = array<i64: 8, 1>}, {pipeline_mode = #tpu.pipeline_mode<synchronous>, transform_indices = @transform_4, window_bounds = array<i64: 1, 1>}, {transform_indices = @transform_5, window_bounds = array<i64: 1, 1, 128>}]} {
    %c0_i32 = arith.constant 0 : i32
    %0 = arith.cmpi eq, %arg1, %c0_i32 : i32
    %1 = arith.extui %0 : i1 to i32
    %c0_i32_0 = arith.constant 0 : i32
    %2 = arith.cmpi ne, %1, %c0_i32_0 : i32
    scf.if %2 {
      %cst_31 = arith.constant 0.000000e+00 : f32
      %96 = vector.broadcast %cst_31 : f32 to vector<2x256xf32>
      %c0_32 = arith.constant 0 : index
      %c0_33 = arith.constant 0 : index
      %97 = vector.load %arg8[%c0_32, %c0_33] : memref<2x256xf32, #tpu.memory_space<vmem>>, vector<2x256xf32>
      tpu.vector_store %arg8[%c0_32, %c0_33], %96 {strides = array<i32>} : memref<2x256xf32, #tpu.memory_space<vmem>>, vector<2x256xf32>,
    } else {
    }
    %c0 = arith.constant 0 : index
    %c0_1 = arith.constant 0 : index
    %c0_2 = arith.constant 0 : index
    %3 = vector.load %arg2[%c0, %c0_1, %c0_2] : memref<1x8x256xf32, #tpu.memory_space<vmem>>, vector<1x8x256xf32>
    %4 = vector.shape_cast %3 : vector<1x8x256xf32> to vector<8x256xf32>
    %c0_3 = arith.constant 0 : index
    %c0_4 = arith.constant 0 : index
    %c0_5 = arith.constant 0 : index
    %5 = vector.load %arg3[%c0_3, %c0_4, %c0_5] : memref<1x8x256xf32, #tpu.memory_space<vmem>>, vector<1x8x256xf32>
    %6 = vector.shape_cast %5 : vector<1x8x256xf32> to vector<8x256xf32>
    %c0_6 = arith.constant 0 : index
    %c0_7 = arith.constant 0 : index
    %7 = vector.load %arg4[%c0_6, %c0_7] : memref<8x1xf32, #tpu.memory_space<vmem>>, vector<8x1xf32>
    %c0_8 = arith.constant 0 : index
    %c0_9 = arith.constant 0 : index
    %8 = vector.load %arg5[%c0_8, %c0_9] : memref<8x1xf32, #tpu.memory_space<vmem>>, vector<8x1xf32>
    %c0_10 = arith.constant 0 : index
    %c0_11 = arith.constant 0 : index
    %9 = vector.load %arg6[%c0_10, %c0_11] : memref<1x1xf32, #tpu.memory_space<vmem>>, vector<1x1xf32>
    %10 = vector.extract %9[0, 0] : f32 from vector<1x1xf32>
    %cst = arith.constant 1.000000e+00 : f32
    %11 = vector.broadcast %cst : f32 to vector<8x256xf32>
    %12 = arith.subf %11, %4 : vector<8x256xf32>
    %cst_12 = arith.constant 1.000000e-30 : f32
    %13 = vector.broadcast %cst_12 : f32 to vector<8x256xf32>
    %14 = arith.addf %4, %13 : vector<8x256xf32>
    %15 = math.log %14 : vector<8x256xf32>
    %cst_13 = arith.constant 2.000000e+00 : f32
    %16 = math.log %cst_13 : f32
    %17 = vector.broadcast %16 : f32 to vector<8x256xf32>
    %18 = arith.divf %15, %17 : vector<8x256xf32>
    %19 = arith.mulf %4, %18 : vector<8x256xf32>
    %cst_14 = arith.constant 1.000000e-30 : f32
    %20 = vector.broadcast %cst_14 : f32 to vector<8x256xf32>
    %21 = arith.addf %12, %20 : vector<8x256xf32>
    %22 = math.log %21 : vector<8x256xf32>
    %cst_15 = arith.constant 2.000000e+00 : f32
    %23 = math.log %cst_15 : f32
    %24 = vector.broadcast %23 : f32 to vector<8x256xf32>
    %25 = arith.divf %22, %24 : vector<8x256xf32>
    %26 = arith.mulf %12, %25 : vector<8x256xf32>
    %27 = vector.broadcast %7 : vector<8x1xf32> to vector<8x256xf32>
    %28 = arith.mulf %27, %19 : vector<8x256xf32>
    %29 = vector.broadcast %8 : vector<8x1xf32> to vector<8x256xf32>
    %30 = arith.mulf %29, %26 : vector<8x256xf32>
    %31 = arith.addf %28, %30 : vector<8x256xf32>
    %32 = vector.extract_strided_slice %31 {offsets = [0, 0], sizes = [2, 256], strides = [1, 1]} : vector<8x256xf32> to vector<2x256xf32>
    %33 = vector.extract_strided_slice %31 {offsets = [2, 0], sizes = [2, 256], strides = [1, 1]} : vector<8x256xf32> to vector<2x256xf32>
    %34 = arith.addf %32, %33 : vector<2x256xf32>
    %35 = vector.extract_strided_slice %31 {offsets = [4, 0], sizes = [2, 256], strides = [1, 1]} : vector<8x256xf32> to vector<2x256xf32>
    %36 = arith.addf %34, %35 : vector<2x256xf32>
    %37 = vector.extract_strided_slice %31 {offsets = [6, 0], sizes = [2, 256], strides = [1, 1]} : vector<8x256xf32> to vector<2x256xf32>
    %38 = arith.addf %36, %37 : vector<2x256xf32>
    %39 = vector.broadcast %10 : f32 to vector<2x256xf32>
    %40 = arith.addf %38, %39 : vector<2x256xf32>
    %cst_16 = arith.constant 1.000000e+00 : f32
    %41 = vector.broadcast %cst_16 : f32 to vector<8x256xf32>
    %42 = arith.subf %41, %6 : vector<8x256xf32>
    %cst_17 = arith.constant 1.000000e-30 : f32
    %43 = vector.broadcast %cst_17 : f32 to vector<8x256xf32>
    %44 = arith.addf %6, %43 : vector<8x256xf32>
    %45 = math.log %44 : vector<8x256xf32>
    %cst_18 = arith.constant 2.000000e+00 : f32
    %46 = math.log %cst_18 : f32
    %47 = vector.broadcast %46 : f32 to vector<8x256xf32>
    %48 = arith.divf %45, %47 : vector<8x256xf32>
    %49 = arith.mulf %6, %48 : vector<8x256xf32>
    %cst_19 = arith.constant 1.000000e-30 : f32
    %50 = vector.broadcast %cst_19 : f32 to vector<8x256xf32>
    %51 = arith.addf %42, %50 : vector<8x256xf32>
    %52 = math.log %51 : vector<8x256xf32>
    %cst_20 = arith.constant 2.000000e+00 : f32
    %53 = math.log %cst_20 : f32
    %54 = vector.broadcast %53 : f32 to vector<8x256xf32>
    %55 = arith.divf %52, %54 : vector<8x256xf32>
    %56 = arith.mulf %42, %55 : vector<8x256xf32>
    %57 = vector.broadcast %7 : vector<8x1xf32> to vector<8x256xf32>
    %58 = arith.mulf %57, %49 : vector<8x256xf32>
    %59 = vector.broadcast %8 : vector<8x1xf32> to vector<8x256xf32>
    %60 = arith.mulf %59, %56 : vector<8x256xf32>
    %61 = arith.addf %58, %60 : vector<8x256xf32>
    %62 = vector.extract_strided_slice %61 {offsets = [0, 0], sizes = [2, 256], strides = [1, 1]} : vector<8x256xf32> to vector<2x256xf32>
    %63 = vector.extract_strided_slice %61 {offsets = [2, 0], sizes = [2, 256], strides = [1, 1]} : vector<8x256xf32> to vector<2x256xf32>
    %64 = arith.addf %62, %63 : vector<2x256xf32>
    %65 = vector.extract_strided_slice %61 {offsets = [4, 0], sizes = [2, 256], strides = [1, 1]} : vector<8x256xf32> to vector<2x256xf32>
    %66 = arith.addf %64, %65 : vector<2x256xf32>
    %67 = vector.extract_strided_slice %61 {offsets = [6, 0], sizes = [2, 256], strides = [1, 1]} : vector<8x256xf32> to vector<2x256xf32>
    %68 = arith.addf %66, %67 : vector<2x256xf32>
    %69 = vector.broadcast %10 : f32 to vector<2x256xf32>
    %70 = arith.addf %68, %69 : vector<2x256xf32>
    %cst_21 = arith.constant 0.000000e+00 : f32
    %71 = vector.broadcast %cst_21 : f32 to vector<2x256xf32>
    %72 = arith.subf %71, %40 : vector<2x256xf32>
    %cst_22 = arith.constant 0.000000e+00 : f32
    %73 = vector.broadcast %cst_22 : f32 to vector<2x256xf32>
    %74 = arith.maximumf %72, %73 : vector<2x256xf32>
    %75 = math.absf %40 : vector<2x256xf32>
    %cst_23 = arith.constant 0.000000e+00 : f32
    %76 = vector.broadcast %cst_23 : f32 to vector<2x256xf32>
    %77 = arith.subf %76, %75 : vector<2x256xf32>
    %78 = math.exp %77 : vector<2x256xf32>
    %79 = math.log1p %78 : vector<2x256xf32>
    %80 = arith.addf %74, %79 : vector<2x256xf32>
    %cst_24 = arith.constant 0.000000e+00 : f32
    %81 = vector.broadcast %cst_24 : f32 to vector<2x256xf32>
    %82 = arith.maximumf %70, %81 : vector<2x256xf32>
    %83 = arith.addf %80, %82 : vector<2x256xf32>
    %84 = math.absf %70 : vector<2x256xf32>
    %cst_25 = arith.constant 0.000000e+00 : f32
    %85 = vector.broadcast %cst_25 : f32 to vector<2x256xf32>
    %86 = arith.subf %85, %84 : vector<2x256xf32>
    %87 = math.exp %86 : vector<2x256xf32>
    %88 = math.log1p %87 : vector<2x256xf32>
    %89 = arith.addf %83, %88 : vector<2x256xf32>
    %c0_26 = arith.constant 0 : index
    %c0_27 = arith.constant 0 : index
    %90 = vector.load %arg8[%c0_26, %c0_27] : memref<2x256xf32, #tpu.memory_space<vmem>>, vector<2x256xf32>
    %91 = arith.addf %90, %89 : vector<2x256xf32>
    %c0_28 = arith.constant 0 : index
    %c0_29 = arith.constant 0 : index
    %92 = vector.load %arg8[%c0_28, %c0_29] : memref<2x256xf32, #tpu.memory_space<vmem>>, vector<2x256xf32>
    tpu.vector_store %arg8[%c0_28, %c0_29], %91 {strides = array<i32>} : memref<2x256xf32, #tpu.memory_space<vmem>>, vector<2x256xf32>,
    %c1_i32 = arith.constant 1 : i32
    %93 = arith.cmpi eq, %arg1, %c1_i32 : i32
    %94 = arith.extui %93 : i1 to i32
    %c0_i32_30 = arith.constant 0 : i32
    %95 = arith.cmpi ne, %94, %c0_i32_30 : i32
    scf.if %95 {
      %c0_31 = arith.constant 0 : index
      %c0_32 = arith.constant 0 : index
      %96 = vector.load %arg8[%c0_31, %c0_32] : memref<2x256xf32, #tpu.memory_space<vmem>>, vector<2x256xf32>
      %97 = vector.shape_cast %96 : vector<2x256xf32> to vector<1x2x256xf32>
      %cst_33 = arith.constant dense<0.000000e+00> : vector<1xf32>
      %98 = vector.multi_reduction <add>, %97, %cst_33 [1, 2] : vector<1x2x256xf32> to vector<1xf32>
      %99 = vector.shape_cast %98 : vector<1xf32> to vector<1x1x1xf32>
      %100 = vector.extract %99[0, 0, 0] : f32 from vector<1x1x1xf32>
      %101 = vector.broadcast %100 : f32 to vector<1x128xf32>
      %c0_34 = arith.constant 0 : index
      %c0_35 = arith.constant 0 : index
      %c0_36 = arith.constant 0 : index
      %102 = vector.load %arg7[%c0_34, %c0_35, %c0_36] : memref<1x1x128xf32, #tpu.memory_space<vmem>>, vector<1x1x128xf32>
      %103 = vector.shape_cast %102 : vector<1x1x128xf32> to vector<1x128xf32>
      %104 = vector.shape_cast %101 : vector<1x128xf32> to vector<1x1x128xf32>
      tpu.vector_store %arg7[%c0_34, %c0_35, %c0_36], %104 {strides = array<i32>} : memref<1x1x128xf32, #tpu.memory_space<vmem>>, vector<1x1x128xf32>,
    } else {
    }
    return
  }
  func.func @transform_0(%arg0: i32, %arg1: i32) -> (i32, i32, i32) {
    %c0_i32 = arith.constant 0 : i32
    %c0_i32_0 = arith.constant 0 : i32
    return %arg0, %c0_i32, %arg1 : i32, i32, i32
  }
  func.func @transform_1(%arg0: i32, %arg1: i32) -> (i32, i32, i32) {
    %c0_i32 = arith.constant 0 : i32
    %c0_i32_0 = arith.constant 0 : i32
    return %arg0, %c0_i32, %arg1 : i32, i32, i32
  }
  func.func @transform_2(%arg0: i32, %arg1: i32) -> (i32, i32) {
    %c0_i32 = arith.constant 0 : i32
    %c0_i32_0 = arith.constant 0 : i32
    %c0_i32_1 = arith.constant 0 : i32
    return %c0_i32, %c0_i32_0 : i32, i32
  }
  func.func @transform_3(%arg0: i32, %arg1: i32) -> (i32, i32) {
    %c0_i32 = arith.constant 0 : i32
    %c0_i32_0 = arith.constant 0 : i32
    %c0_i32_1 = arith.constant 0 : i32
    return %c0_i32, %c0_i32_0 : i32, i32
  }
  func.func @transform_4(%arg0: i32, %arg1: i32) -> (i32, i32) {
    %c0_i32 = arith.constant 0 : i32
    %c0_i32_0 = arith.constant 0 : i32
    %c0_i32_1 = arith.constant 0 : i32
    return %c0_i32, %c0_i32_0 : i32, i32
  }
  func.func @transform_5(%arg0: i32, %arg1: i32) -> (i32, i32, i32) {
    %c0_i32 = arith.constant 0 : i32
    %c0_i32_0 = arith.constant 0 : i32
    %c0_i32_1 = arith.constant 0 : i32
    return %arg0, %c0_i32, %c0_i32_0 : i32, i32, i32
  }
}

</mosaic_0001>

<llo_original>
// kernel: tpu_custom_call.1
$region0: #{tpu_custom_call.1}
  #allocation0 [shape = 'u32[]', space=smem, size = 0x4, offset = 0x4, fixed_abs, tag = 'smem constant byte address 0x4 - core index']
  #allocation1 [shape = 'u32[144,128]{1,0:T(1,128)}', space=vmem, size = 0x12000, scoped, tag = 'internal scratch']
  #allocation2 [shape = 'f32[2,256]{1,0:T(2,128)}', space=vmem, size = 0x800, scoped, tag = 'scratch operand']
  #allocation3 [shape = 'f32[1,1]{1,0:T(1,128)S(1)}', space=vmem, size = 0x200, scoped, tag = 'scoped memory for tpu_custom_call.1']
  %s0 = inlined_call_operand.hbm [shape: f32[2,8,512], index: 0, kind: input, shape index: {}]
  %s1 = inlined_call_operand.hbm [shape: f32[2,8,512], index: 1, kind: input, shape index: {}]
  %s2 = inlined_call_operand.vmem [shape: f32[8,1], index: 2, kind: input, shape index: {}]
  %s3 = inlined_call_operand.vmem [shape: f32[8,1], index: 3, kind: input, shape index: {}]
  %s4 = inlined_call_operand.<no memory space> [shape: f32[1,1], index: 4, kind: input, shape index: {}]
  %s5 = inlined_call_operand.hbm [shape: f32[2,1,128], index: 5, kind: output, shape index: {}]
  %s6 = sld [smem:[#allocation0]]
  $region69: #{tpu_custom_call.1} parent=0
    _
  %s8 = ssub.s32 1, %s6
  %s9 = scalar_select 0, %s8, %s6
  %v10 = vstv %s4
  %11 = vst [vmem:[#allocation3] sm:$0x1] %v10
  $region1: #{tpu_custom_call.1} parent=0
    #allocation4 [shape = 'u8[16384]{0}', space=vmem, size = 0x4000, scoped, tag = 'input window, operand 0']
    #allocation5 [shape = 's32[2]{0}', space=sflag, size = 0x8, scoped, tag = 'scoped memory for tpu_custom_call.1']
    #allocation6 [shape = 's32[2]{0}', space=sflag, size = 0x8, scoped, tag = 'scoped memory for tpu_custom_call.1']
    #allocation7 [shape = 'u8[16384]{0}', space=vmem, size = 0x4000, scoped, tag = 'input window, operand 1']
    #allocation8 [shape = 's32[2]{0}', space=sflag, size = 0x8, scoped, tag = 'scoped memory for tpu_custom_call.1']
    #allocation9 [shape = 'u8[1024]{0}', space=vmem, size = 0x400, scoped, tag = 'output window, operand 0']
    %12 = vsyncpa [#allocation5], 0
    %s13 = scalar_lea.sflag [#allocation5], 1
    %14 = vsyncpa %s13, 0
    %15 = vsyncpa [#allocation8], 0
    %s16 = scalar_lea.sflag [#allocation8], 1
    %17 = vsyncpa %s16, 0
    %18 = vsyncpa [#allocation6], 0
    %s19 = scalar_lea.sflag [#allocation6], 1
    %20 = vsyncpa %s19, 0
    loop: start=0, step=1, limit=6
    $region2: #{tpu_custom_call.1} parent=1 // loop_pre_header
      _
    $region3: #{tpu_custom_call.1} parent=1 // loop_header
      %s22 = sphi 0, %s26
      %p23 = scmp.ge.s32.totalorder %s22, 6
      %s29 = sphi 0, %s41
      %s30 = sphi 0, %s37
      %s31 = sphi 0, %s29
      %s32 = sphi 0, %s30
      %s33 = sphi 0, %s31
      %s34 = sphi 0, %s32
      %s46 = sphi 0, %s48
      %s49 = sphi 0, %s46
      %s50 = sphi 0, %s49
      %s66 = sphi 0, %s50
      %s74 = sphi 0, %s76
      %s77 = sphi 0, %s74
      %s78 = sphi 0, %s77
      %s94 = sphi 0, %s78
      %s98 = sphi 0, %s98
      %s100 = sphi 0, %s98
      %s101 = sphi 0, %s100
      %s115 = sphi 0, %s101
      %s119 = sphi 0, %s119
      %s121 = sphi 0, %s119
      %s122 = sphi 0, %s121
      %s136 = sphi 0, %s122
      %s140 = sphi 0, %s140
      %s142 = sphi 0, %s140
      %s143 = sphi 0, %s142
      %s157 = sphi 0, %s143
      %s163 = sphi 0, %s165
      %s166 = sphi 0, %s163
      %s167 = sphi 0, %s166
      %s183 = sphi 0, %s167
    $region4: #{tpu_custom_call.1} parent=1 // loop_header_branch
      %25 = sbr.rel (%p23) target = $region8
    $region5: #{tpu_custom_call.1} parent=1 // loop_body
      %s27 = ssub.s32 %s22, 1
      %s28 = ssub.s32 %s22, 2
      %s35 = sadd.s32 1, %s30
      %p36 = scmp.ge.s32.totalorder %s35, 2
      %s37 = scalar_select %p36, 0, %s35
      %s38 = sadd.s32 1, %s29
      %s39 = scalar_select %p36, %s38, %s29
      %p40 = scmp.ge.s32.totalorder %s39, 2
      %s41 = scalar_select %p40, 0, %s39
      %s42 = ssub.s32 %s29, %s41
      %s43 = ssub.s32 %s30, %s37
      %s44 = sor.u32 %s42, %s43
      %p45 = scmp.eq.s32.totalorder %s44, 0
      %s47 = sadd.s32 %s46, 1
      %s48 = scalar_select %p45, %s46, %s47
      %p51 = pneg %p45
      %p52 = scmp.eq.s32.totalorder %s22, 3
      %p53 = por %p51, %p52
      %p54 = scmp.ne.s32.totalorder %s46, %s49
      %p55 = scmp.eq.s32.totalorder %s22, 0
      %p56 = por %p54, %p55
      %p57 = scmp.ne.s32.totalorder %s46, %s49
      %p58 = scmp.eq.s32.totalorder %s27, 3
      %p59 = por %p57, %p58
      %p60 = scmp.ne.s32.totalorder %s49, %s50
      %p61 = scmp.eq.s32.totalorder %s27, 0
      %p62 = por %p60, %p61
      %p63 = scmp.ne.s32.totalorder %s49, %s50
      %p64 = scmp.eq.s32.totalorder %s28, 3
      %p65 = por %p63, %p64
      %p67 = scmp.ne.s32.totalorder %s50, %s66
      %p68 = scmp.eq.s32.totalorder %s28, 0
      %p69 = por %p67, %p68
      %s70 = ssub.s32 %s29, %s41
      %s71 = ssub.s32 %s30, %s37
      %s72 = sor.u32 %s70, %s71
      %p73 = scmp.eq.s32.totalorder %s72, 0
      %s75 = sadd.s32 %s74, 1
      %s76 = scalar_select %p73, %s74, %s75
      %p79 = pneg %p73
      %p80 = scmp.eq.s32.totalorder %s22, 3
      %p81 = por %p79, %p80
      %p82 = scmp.ne.s32.totalorder %s74, %s77
      %p83 = scmp.eq.s32.totalorder %s22, 0
      %p84 = por %p82, %p83
      %p85 = scmp.ne.s32.totalorder %s74, %s77
      %p86 = scmp.eq.s32.totalorder %s27, 3
      %p87 = por %p85, %p86
      %p88 = scmp.ne.s32.totalorder %s77, %s78
      %p89 = scmp.eq.s32.totalorder %s27, 0
      %p90 = por %p88, %p89
      %p91 = scmp.ne.s32.totalorder %s77, %s78
      %p92 = scmp.eq.s32.totalorder %s28, 3
      %p93 = por %p91, %p92
      %p95 = scmp.ne.s32.totalorder %s78, %s94
      %p96 = scmp.eq.s32.totalorder %s28, 0
      %p97 = por %p95, %p96
      %s99 = sadd.s32 %s98, 1
      %p102 = scmp.eq.s32.totalorder %s22, 3
      %p103 = scmp.ne.s32.totalorder %s98, %s100
      %p104 = scmp.eq.s32.totalorder %s22, 0
      %p105 = por %p103, %p104
      %p106 = scmp.ne.s32.totalorder %s98, %s100
      %p107 = scmp.eq.s32.totalorder %s27, 3
      %p108 = por %p106, %p107
      %p109 = scmp.ne.s32.totalorder %s100, %s101
      %p110 = scmp.eq.s32.totalorder %s27, 0
      %p111 = por %p109, %p110
      %p112 = scmp.ne.s32.totalorder %s100, %s101
      %p113 = scmp.eq.s32.totalorder %s28, 3
      %p114 = por %p112, %p113
      %p116 = scmp.ne.s32.totalorder %s101, %s115
      %p117 = scmp.eq.s32.totalorder %s28, 0
      %p118 = por %p116, %p117
      %s120 = sadd.s32 %s119, 1
      %p123 = scmp.eq.s32.totalorder %s22, 3
      %p124 = scmp.ne.s32.totalorder %s119, %s121
      %p125 = scmp.eq.s32.totalorder %s22, 0
      %p126 = por %p124, %p125
      %p127 = scmp.ne.s32.totalorder %s119, %s121
      %p128 = scmp.eq.s32.totalorder %s27, 3
      %p129 = por %p127, %p128
      %p130 = scmp.ne.s32.totalorder %s121, %s122
      %p131 = scmp.eq.s32.totalorder %s27, 0
      %p132 = por %p130, %p131
      %p133 = scmp.ne.s32.totalorder %s121, %s122
      %p134 = scmp.eq.s32.totalorder %s28, 3
      %p135 = por %p133, %p134
      %p137 = scmp.ne.s32.totalorder %s122, %s136
      %p138 = scmp.eq.s32.totalorder %s28, 0
      %p139 = por %p137, %p138
      %s141 = sadd.s32 %s140, 1
      %p144 = scmp.eq.s32.totalorder %s22, 3
      %p145 = scmp.ne.s32.totalorder %s140, %s142
      %p146 = scmp.eq.s32.totalorder %s22, 0
      %p147 = por %p145, %p146
      %p148 = scmp.ne.s32.totalorder %s140, %s142
      %p149 = scmp.eq.s32.totalorder %s27, 3
      %p150 = por %p148, %p149
      %p151 = scmp.ne.s32.totalorder %s142, %s143
      %p152 = scmp.eq.s32.totalorder %s27, 0
      %p153 = por %p151, %p152
      %p154 = scmp.ne.s32.totalorder %s142, %s143
      %p155 = scmp.eq.s32.totalorder %s28, 3
      %p156 = por %p154, %p155
      %p158 = scmp.ne.s32.totalorder %s143, %s157
      %p159 = scmp.eq.s32.totalorder %s28, 0
      %p160 = por %p158, %p159
      %s161 = ssub.s32 %s29, %s41
      %p162 = scmp.eq.s32.totalorder %s161, 0
      %s164 = sadd.s32 %s163, 1
      %s165 = scalar_select %p162, %s163, %s164
      %p168 = pneg %p162
      %p169 = scmp.eq.s32.totalorder %s22, 3
      %p170 = por %p168, %p169
      %p171 = scmp.ne.s32.totalorder %s163, %s166
      %p172 = scmp.eq.s32.totalorder %s22, 0
      %p173 = por %p171, %p172
      %p174 = scmp.ne.s32.totalorder %s163, %s166
      %p175 = scmp.eq.s32.totalorder %s27, 3
      %p176 = por %p174, %p175
      %p177 = scmp.ne.s32.totalorder %s166, %s167
      %p178 = scmp.eq.s32.totalorder %s27, 0
      %p179 = por %p177, %p178
      %p180 = scmp.ne.s32.totalorder %s166, %s167
      %p181 = scmp.eq.s32.totalorder %s28, 3
      %p182 = por %p180, %p181
      %p184 = scmp.ne.s32.totalorder %s167, %s183
      %p185 = scmp.eq.s32.totalorder %s28, 0
      %p186 = por %p184, %p185
      %p187 = scmp.le.s32.totalorder 1, %s22
      %p188 = scmp.lt.s32.totalorder %s22, 5
      %p189 = pnand %p187, %p188
      %p190 = pneg %p189
      // Predicated region
      $region9: #{tpu_custom_call.1} parent=5 // pred_check
        _
      $region10: #{tpu_custom_call.1} parent=5 // pred_check_branch
        %192 = sbr.rel (%p189) target = $region12
      $region11: #{tpu_custom_call.1} parent=5 // pred_region
        %s193 = ssub.s32 %s22, 1
        // Predicated region
        $region13: #{tpu_custom_call.1} parent=11 // pred_check
          %p194 = pneg %p111
        $region14: #{tpu_custom_call.1} parent=11 // pred_check_branch
          %196 = sbr.rel (%p194) target = $region16
        $region15: #{tpu_custom_call.1} parent=11 // pred_region
          _
        $region16: #{tpu_custom_call.1} parent=11 // pred_fallthru
          _
        // Predicated region
        $region17: #{tpu_custom_call.1} parent=11 // pred_check
          %p197 = pneg %p132
        $region18: #{tpu_custom_call.1} parent=11 // pred_check_branch
          %199 = sbr.rel (%p197) target = $region20
        $region19: #{tpu_custom_call.1} parent=11 // pred_region
          _
        $region20: #{tpu_custom_call.1} parent=11 // pred_fallthru
          _
        // Predicated region
        $region21: #{tpu_custom_call.1} parent=11 // pred_check
          %p200 = pneg %p153
        $region22: #{tpu_custom_call.1} parent=11 // pred_check_branch
          %202 = sbr.rel (%p200) target = $region24
        $region23: #{tpu_custom_call.1} parent=11 // pred_region
          _
        $region24: #{tpu_custom_call.1} parent=11 // pred_fallthru
          _
      $region12: #{tpu_custom_call.1} parent=5 // pred_fallthru
        _
      %p203 = scmp.lt.s32.totalorder %s22, 4
      // Predicated region
      $region25: #{tpu_custom_call.1} parent=5 // pred_check
        %p204 = pneg %p203
      $region26: #{tpu_custom_call.1} parent=5 // pred_check_branch
        %206 = sbr.rel (%p204) target = $region28
      $region27: #{tpu_custom_call.1} parent=5 // pred_region
        // Predicated region
        $region29: #{tpu_custom_call.1} parent=27 // pred_check
          %p207 = pneg %p56
        $region30: #{tpu_custom_call.1} parent=27 // pred_check_branch
          %209 = sbr.rel (%p207) target = $region32
        $region31: #{tpu_custom_call.1} parent=27 // pred_region
          %s210 = sand.u32 %s46, 1
          %s211 = scalar_lea.sflag [#allocation5], %s210
          %s212 = sand.u32 %s46, 1
          %s213 = smul.addr %s212, 16
          %s214 = scalar_lea.vmem [#allocation4], %s213
          %s215 = smul.u32 2, %s30
          %s217 = ssub.s32 256, 256
          %218 = vsyncadd %s211, %s217
          %s219 = smul.addr %s29, 4
          %s220 = sadd.s32 %s215, %s219
          %s221 = smul.addr %s220, 128
          %s222 = scalar_lea.hbm %s0, %s221
          %s224 = sshll.u32 %s214, 4
          %s225 = int_to_ptr.vmem [resolvable:$true] %s224
          %227 = dma.hbm_to_vmem [thread:$0]  %s222, 256, %s225, %s211
        $region32: #{tpu_custom_call.1} parent=27 // pred_fallthru
          _
        // Predicated region
        $region33: #{tpu_custom_call.1} parent=27 // pred_check
          %p228 = pneg %p84
        $region34: #{tpu_custom_call.1} parent=27 // pred_check_branch
          %230 = sbr.rel (%p228) target = $region36
        $region35: #{tpu_custom_call.1} parent=27 // pred_region
          %s231 = sand.u32 %s74, 1
          %s232 = scalar_lea.sflag [#allocation8], %s231
          %s233 = sand.u32 %s74, 1
          %s234 = smul.addr %s233, 16
          %s235 = scalar_lea.vmem [#allocation7], %s234
          %s236 = smul.u32 2, %s30
          %s238 = ssub.s32 256, 256
          %239 = vsyncadd %s232, %s238
          %s240 = smul.addr %s29, 4
          %s241 = sadd.s32 %s236, %s240
          %s242 = smul.addr %s241, 128
          %s243 = scalar_lea.hbm %s1, %s242
          %s245 = sshll.u32 %s235, 4
          %s246 = int_to_ptr.vmem [resolvable:$true] %s245
          %248 = dma.hbm_to_vmem [thread:$0]  %s243, 256, %s246, %s232
        $region36: #{tpu_custom_call.1} parent=27 // pred_fallthru
          _
      $region28: #{tpu_custom_call.1} parent=5 // pred_fallthru
        _
      %p249 = scmp.le.s32.totalorder 1, %s22
      %p250 = scmp.lt.s32.totalorder %s22, 5
      %p251 = pnand %p249, %p250
      %p252 = pneg %p251
      // Predicated region
      $region37: #{tpu_custom_call.1} parent=5 // pred_check
        _
      $region38: #{tpu_custom_call.1} parent=5 // pred_check_branch
        %254 = sbr.rel (%p251) target = $region40
      $region39: #{tpu_custom_call.1} parent=5 // pred_region
        %s255 = ssub.s32 %s22, 1
        %s256 = sand.u32 %s49, 1
        %s257 = scalar_lea.sflag [#allocation5], %s256
        %s258 = sand.u32 %s49, 1
        %s259 = smul.addr %s258, 16
        %s260 = scalar_lea.vmem [#allocation4], %s259
        // Predicated region
        $region41: #{tpu_custom_call.1} parent=39 // pred_check
          %p261 = pneg %p62
        $region42: #{tpu_custom_call.1} parent=39 // pred_check_branch
          %263 = sbr.rel (%p261) target = $region44
        $region43: #{tpu_custom_call.1} parent=39 // pred_region
          %264 = dma.done %s257, 256
        $region44: #{tpu_custom_call.1} parent=39 // pred_fallthru
          _
        %s265 = sand.u32 %s77, 1
        %s266 = scalar_lea.sflag [#allocation8], %s265
        %s267 = sand.u32 %s77, 1
        %s268 = smul.addr %s267, 16
        %s269 = scalar_lea.vmem [#allocation7], %s268
        // Predicated region
        $region45: #{tpu_custom_call.1} parent=39 // pred_check
          %p270 = pneg %p90
        $region46: #{tpu_custom_call.1} parent=39 // pred_check_branch
          %272 = sbr.rel (%p270) target = $region48
        $region47: #{tpu_custom_call.1} parent=39 // pred_region
          %273 = dma.done %s266, 256
        $region48: #{tpu_custom_call.1} parent=39 // pred_fallthru
          _
        %s274 = sand.u32 %s49, 1
        %s275 = scalar_lea.sflag [#allocation5], %s274
        %s276 = sand.u32 %s49, 1
        %s277 = smul.addr %s276, 16
        %s278 = scalar_lea.vmem [#allocation4], %s277
        %p279 = pneg %p62
        %p280 = pneg %p59
        %s281 = sand.u32 %s77, 1
        %s282 = scalar_lea.sflag [#allocation8], %s281
        %s283 = sand.u32 %s77, 1
        %s284 = smul.addr %s283, 16
        %s285 = scalar_lea.vmem [#allocation7], %s284
        %p286 = pneg %p90
        %p287 = pneg %p87
        %p288 = pneg %p111
        %p289 = pneg %p108
        %p290 = pneg %p132
        %p291 = pneg %p129
        %p292 = pneg %p153
        %p293 = pneg %p150
        %p294 = pneg %p179
        %p295 = pneg %p176
        %s296 = sand.u32 %s166, 1
        %s297 = scalar_lea.sflag [#allocation6], %s296
        %s298 = sand.u32 %s166, 1
        %s299 = scalar_lea.vmem [#allocation9], %s298
        %s300 = smul.u32 2, %s32
        %s301 = smul.u32 2, %s32
        %p302 = scmp.eq.s32.totalorder %s32, 0
        // Predicated region
        $region49: #{tpu_custom_call.1} parent=39 // pred_check
          %p303 = pneg %p302
        $region50: #{tpu_custom_call.1} parent=39 // pred_check_branch
          %305 = sbr.rel (%p303) target = $region52
        $region51: #{tpu_custom_call.1} parent=39 // pred_region
          %306 = vst [vmem:[#allocation2] sm:$0xf] 0.0
        $region52: #{tpu_custom_call.1} parent=39 // pred_fallthru
          _
        %v307 = vld [vmem:[%s260] sm:$0xff]
        %v308 = vld [vmem:[%s260 + $0x8] sm:$0xff]
        %v309 = vld [vmem:[%s269] sm:$0xff]
        %v310 = vld [vmem:[%s269 + $0x8] sm:$0xff]
        %v311 = vld [vmem:[%s2] sm:$0xff]
        %v312 = vld [vmem:[%s3] sm:$0xff]
        %v313 = vld [vmem:[#allocation3] sm:$0x1]
        %s314 = vtos %v313
        %v315 = vsub.f32 1.0, %v307
        %v316 = vsub.f32 1.0, %v308
        %v317 = vadd.f32 %v307, 1e-30
        %v318 = vadd.f32 %v308, 1e-30
        %v319 = vlog2.pop %v317
        %v320 = vmul.f32 %v319, 0.6931472
        %v321 = vlog2.pop %v318
        %v322 = vmul.f32 %v321, 0.6931472
        %v323 = vrcp.pop 0.6931472
        %v324 = vmul.f32 %v320, %v323
        %v325 = vmul.f32 %v322, %v323
        %v326 = vmul.f32 %v307, %v324
        %v327 = vmul.f32 %v308, %v325
        %v328 = vadd.f32 %v315, 1e-30
        %v329 = vadd.f32 %v316, 1e-30
        %v330 = vlog2.pop %v328
        %v331 = vmul.f32 %v330, 0.6931472
        %v332 = vlog2.pop %v329
        %v333 = vmul.f32 %v332, 0.6931472
        %v334 = vmul.f32 %v331, %v323
        %v335 = vmul.f32 %v333, %v323
        %v336 = vmul.f32 %v315, %v334
        %v337 = vmul.f32 %v316, %v335
        %339 = vset.pattern.permute.xlu0 0
        %340 = vperm.xlu0 %339, %v311
        %v341 = vpop.permute.xlu0 %340
        %v343 = vmul.f32 %v341, %v326
        %v344 = vmul.f32 %v341, %v327
        %346 = vset.pattern.permute.xlu0 0
        %347 = vperm.xlu0 %346, %v312
        %v348 = vpop.permute.xlu0 %347
        %v350 = vmul.f32 %v348, %v336
        %v351 = vmul.f32 %v348, %v337
        %v352 = vadd.f32 %v343, %v350
        %v353 = vadd.f32 %v344, %v351
        %v356 = vrot.slane %v352, 2
        %v357 = vrot.slane %v353, 2
        %v360 = vadd.f32 %v352, %v356
        %v361 = vadd.f32 %v353, %v357
        %v362 = vrot.slane %v352, 4
        %v363 = vrot.slane %v353, 4
        %v366 = vadd.f32 %v360, %v362
        %v367 = vadd.f32 %v361, %v363
        %v368 = vrot.slane %v352, 6
        %v369 = vrot.slane %v353, 6
        %v372 = vadd.f32 %v366, %v368
        %v373 = vadd.f32 %v367, %v369
        %v374 = vstv %s314
        %v375 = vadd.f32 %v372, %v374
        %v376 = vadd.f32 %v373, %v374
        %v377 = vsub.f32 1.0, %v309
        %v378 = vsub.f32 1.0, %v310
        %v379 = vadd.f32 %v309, 1e-30
        %v380 = vadd.f32 %v310, 1e-30
        %v381 = vlog2.pop %v379
        %v382 = vmul.f32 %v381, 0.6931472
        %v383 = vlog2.pop %v380
        %v384 = vmul.f32 %v383, 0.6931472
        %v385 = vmul.f32 %v382, %v323
        %v386 = vmul.f32 %v384, %v323
        %v387 = vmul.f32 %v309, %v385
        %v388 = vmul.f32 %v310, %v386
        %v389 = vadd.f32 %v377, 1e-30
        %v390 = vadd.f32 %v378, 1e-30
        %v391 = vlog2.pop %v389
        %v392 = vmul.f32 %v391, 0.6931472
        %v393 = vlog2.pop %v390
        %v394 = vmul.f32 %v393, 0.6931472
        %v395 = vmul.f32 %v392, %v323
        %v396 = vmul.f32 %v394, %v323
        %v397 = vmul.f32 %v377, %v395
        %v398 = vmul.f32 %v378, %v396
        %v399 = vmul.f32 %v341, %v387
        %v400 = vmul.f32 %v341, %v388
        %v401 = vmul.f32 %v348, %v397
        %v402 = vmul.f32 %v348, %v398
        %v403 = vadd.f32 %v399, %v401
        %v404 = vadd.f32 %v400, %v402
        %v407 = vrot.slane %v403, 2
        %v408 = vrot.slane %v404, 2
        %v411 = vadd.f32 %v403, %v407
        %v412 = vadd.f32 %v404, %v408
        %v413 = vrot.slane %v403, 4
        %v414 = vrot.slane %v404, 4
        %v417 = vadd.f32 %v411, %v413
        %v418 = vadd.f32 %v412, %v414
        %v419 = vrot.slane %v403, 6
        %v420 = vrot.slane %v404, 6
        %v423 = vadd.f32 %v417, %v419
        %v424 = vadd.f32 %v418, %v420
        %v425 = vadd.f32 %v423, %v374
        %v426 = vadd.f32 %v424, %v374
        %v427 = vsub.f32 0.0, %v375
        %v428 = vsub.f32 0.0, %v376
        %v429 = vmax.f32 %v427, 0.0
        %v430 = vmax.f32 %v428, 0.0
        %v431 = vand.u32 2147483647, %v375
        %v432 = vand.u32 2147483647, %v376
        %v433 = vsub.f32 0.0, %v431
        %v434 = vsub.f32 0.0, %v432
        %v435 = vmul.f32 %v433, 1.442695
        %v436 = vpow.pop %v435
        %v437 = vmul.f32 %v434, 1.442695
        %v438 = vpow.pop %v437
        %v439 = vadd.f32 %v436, 1.0
        %v440 = vlog2.pop %v439
        %v441 = vmul.f32 %v440, 0.6931472
        %v442 = vmul.f32 -0.5, %v436
        %v443 = vadd.f32 %v442, 1.0
        %v444 = vmul.f32 %v443, %v436
        %v445 = vand.u32 2147483647, %v436
        %vm446 = vcmp.lt.f32.partialorder %v445, 0.0004427343
        %v447 = vsel %vm446, %v444, %v441
        %v448 = vadd.f32 %v438, 1.0
        %v449 = vlog2.pop %v448
        %v450 = vmul.f32 %v449, 0.6931472
        %v451 = vmul.f32 -0.5, %v438
        %v452 = vadd.f32 %v451, 1.0
        %v453 = vmul.f32 %v452, %v438
        %v454 = vand.u32 2147483647, %v438
        %vm455 = vcmp.lt.f32.partialorder %v454, 0.0004427343
        %v456 = vsel %vm455, %v453, %v450
        %v457 = vadd.f32 %v429, %v447
        %v458 = vadd.f32 %v430, %v456
        %v459 = vmax.f32 %v425, 0.0
        %v460 = vmax.f32 %v426, 0.0
        %v461 = vadd.f32 %v457, %v459
        %v462 = vadd.f32 %v458, %v460
        %v463 = vand.u32 2147483647, %v425
        %v464 = vand.u32 2147483647, %v426
        %v465 = vsub.f32 0.0, %v463
        %v466 = vsub.f32 0.0, %v464
        %v467 = vmul.f32 %v465, 1.442695
        %v468 = vpow.pop %v467
        %v469 = vmul.f32 %v466, 1.442695
        %v470 = vpow.pop %v469
        %v471 = vadd.f32 %v468, 1.0
        %v472 = vlog2.pop %v471
        %v473 = vmul.f32 %v472, 0.6931472
        %v474 = vmul.f32 -0.5, %v468
        %v475 = vadd.f32 %v474, 1.0
        %v476 = vmul.f32 %v475, %v468
        %v477 = vand.u32 2147483647, %v468
        %vm478 = vcmp.lt.f32.partialorder %v477, 0.0004427343
        %v479 = vsel %vm478, %v476, %v473
        %v480 = vadd.f32 %v470, 1.0
        %v481 = vlog2.pop %v480
        %v482 = vmul.f32 %v481, 0.6931472
        %v483 = vmul.f32 -0.5, %v470
        %v484 = vadd.f32 %v483, 1.0
        %v485 = vmul.f32 %v484, %v470
        %v486 = vand.u32 2147483647, %v470
        %vm487 = vcmp.lt.f32.partialorder %v486, 0.0004427343
        %v488 = vsel %vm487, %v485, %v482
        %v489 = vadd.f32 %v461, %v479
        %v490 = vadd.f32 %v462, %v488
        %v491 = vld [vmem:[#allocation2] sm:$0xf]
        %v494 = vcombine.low %v489, %v490
        %v496 = vunpack.c.l.s4 1983009808
        %v497 = vunpack.c.0.s8 %v496
        %v498 = vlaneseq
        %v499 = vshrl.u32 %v498, 7
        %v500 = vsub.s32 %v497, %v499
        %v501 = vrot.slane %v494, %v500
        %v503 = vadd.f32 %v491, %v501
        %504 = vst [vmem:[#allocation2] sm:$0xf] %v503
        %p505 = scmp.eq.s32.totalorder %s32, 1
        // Predicated region
        $region53: #{tpu_custom_call.1} parent=39 // pred_check
          %p506 = pneg %p505
        $region54: #{tpu_custom_call.1} parent=39 // pred_check_branch
          %508 = sbr.rel (%p506) target = $region56
        $region55: #{tpu_custom_call.1} parent=39 // pred_region
          %v509 = vld [vmem:[#allocation2] sm:$0xf]
          %v512 = vunpack.c.l.s4 1983009808
          %v513 = vunpack.c.0.s8 %v512
          %v514 = vlaneseq
          %v515 = vshrl.u32 %v514, 7
          %v516 = vsub.s32 %v513, %v515
          %v517 = vrot.slane %v509, %v516
          %v518 = vcombine.high %v517, %v517
          %vm521 = vcmask 1041408
          %v522 = vsel %vm521, %v517, 0.0
          %v523 = vsel %vm521, %v518, 0.0
          %v524 = vadd.f32 %v522, %v523
          %525 = vadd.xlane.f32.xlu0 %v524
          %v526 = vpop.xlane.xlu0 %525
          %v527 = vrot.slane %v526, 4
          %v528 = vadd.f32 %v526, %v527
          %v529 = vrot.slane %v528, 2
          %v530 = vadd.f32 %v528, %v529
          %v531 = vrot.slane %v530, 1
          %v532 = vadd.f32 %v530, %v531
          %s533 = vtos %v532
          %v534 = vstv %s533
          %535 = vst [vmem:[%s299] sm:$0x1] %v534
        $region56: #{tpu_custom_call.1} parent=39 // pred_fallthru
          _
        %s536 = sand.u32 %s166, 1
        %s537 = scalar_lea.sflag [#allocation6], %s536
        %s538 = sand.u32 %s166, 1
        %s539 = scalar_lea.vmem [#allocation9], %s538
        // Predicated region
        $region57: #{tpu_custom_call.1} parent=39 // pred_check
          %p540 = pneg %p176
        $region58: #{tpu_custom_call.1} parent=39 // pred_check_branch
          %542 = sbr.rel (%p540) target = $region60
        $region59: #{tpu_custom_call.1} parent=39 // pred_region
          %s544 = ssub.s32 16, 16
          %545 = vsyncadd %s537, %s544
          %s546 = smul.addr %s31, 16
          %s547 = scalar_lea.hbm %s5, %s546
          %s549 = sshll.u32 %s539, 4
          %s550 = int_to_ptr.vmem [resolvable:$true] %s549
          %552 = dma.vmem_to_hbm [thread:$0]  %s550, 16, %s547, %s537
        $region60: #{tpu_custom_call.1} parent=39 // pred_fallthru
          _
      $region40: #{tpu_custom_call.1} parent=5 // pred_fallthru
        _
      %p553 = scmp.le.s32.totalorder 2, %s22
      // Predicated region
      $region61: #{tpu_custom_call.1} parent=5 // pred_check
        %p554 = pneg %p553
      $region62: #{tpu_custom_call.1} parent=5 // pred_check_branch
        %556 = sbr.rel (%p554) target = $region64
      $region63: #{tpu_custom_call.1} parent=5 // pred_region
        %s557 = ssub.s32 %s22, 2
        // Predicated region
        $region65: #{tpu_custom_call.1} parent=63 // pred_check
          %p558 = pneg %p182
        $region66: #{tpu_custom_call.1} parent=63 // pred_check_branch
          %560 = sbr.rel (%p558) target = $region68
        $region67: #{tpu_custom_call.1} parent=63 // pred_region
          %s561 = sand.u32 %s167, 1
          %s562 = scalar_lea.sflag [#allocation6], %s561
          %s563 = sand.u32 %s167, 1
          %s564 = scalar_lea.vmem [#allocation9], %s563
          %565 = dma.done %s562, 16
        $region68: #{tpu_custom_call.1} parent=63 // pred_fallthru
          _
      $region64: #{tpu_custom_call.1} parent=5 // pred_fallthru
        _
    $region6: #{tpu_custom_call.1} parent=1 // loop_footer
      %s26 = sadd.s32 1, %s22
    $region7: #{tpu_custom_call.1} parent=1 // loop_footer_branch
      %21 = sbr.rel target = $region3
    $region8: #{tpu_custom_call.1} parent=1 // loop_exit
      _
    %566 = vsyncpa [#allocation5], 1
    %s567 = scalar_lea.sflag [#allocation5], 1
    %568 = vsyncpa %s567, 1
    %569 = vsyncpa [#allocation8], 1
    %s570 = scalar_lea.sflag [#allocation8], 1
    %571 = vsyncpa %s570, 1
    %572 = vsyncpa [#allocation6], 1
    %s573 = scalar_lea.sflag [#allocation6], 1
    %574 = vsyncpa %s573, 1

</llo_original>
